<compile_context>
chip_gen: v6e
topology: v6e:2x2x1
jax: 0.10.0
libtpu: 0.0.40
codegen_flags: <defaults>
</compile_context>

<pallas_src>
import jax
import jax.numpy as jnp
from jax.experimental import pallas as pl
from jax.experimental.pallas import tpu as pltpu


# ---------------------------------------------------------------------------
# helpers
# ---------------------------------------------------------------------------

def _round_up(v, m):
    return ((v + m - 1) // m) * m


def _choose_tiling(n, tm_max, tk_max, adj_bytes):
    """Pick (npad, tm, tk) without the lcm-padding trap.

    We score a handful of node-dim alignments with a crude per-stage cost model
    (fixed ~0.35us per grid step + adjacency HBM time) and keep the cheapest.
    tm / tk always divide npad; tm keeps >= 2 row tiles so the "parallel" row
    axis shards across both TensorCores on v7x.
    """
    tm_max = max(int(tm_max), 128)
    tk_max = max(int(tk_max), 256)
    best = None
    for align in (256, 512, 1024, 2048):
        npad = _round_up(n, align)
        tm = 128                                    # 128 always divides npad
        for cand in (512, 256):
            if cand <= tm_max and npad % cand == 0 and npad // cand >= 2:
                tm = cand
                break
        tk = 256                                    # 256 always divides npad
        for cand in (2048, 1024, 512):
            if cand <= tk_max and npad % cand == 0:
                tk = cand
                break
        steps = (npad // tm) * (npad // tk)
        step_bytes = 2 * tm * tk * adj_bytes        # two adjacency tiles / step
        cost = steps * (0.35e-6 + step_bytes / 1.0e12)
        if best is None or cost < best[0]:
            best = (cost, npad, tm, tk)
    return best[1], best[2], best[3]


def _quantize_rows_int8(a):
    """Per-row symmetric int8 quantization: a[i, :] ~= scale[i] * q[i, :]."""
    a = a.astype(jnp.float32)
    amax = jnp.max(jnp.abs(a), axis=1, keepdims=True)
    scale = jnp.maximum(amax, 1e-30) / 127.0
    q = jnp.clip(jnp.round(a / scale), -127.0, 127.0).astype(jnp.int8)
    return q, scale


# ---------------------------------------------------------------------------
# Kernels
# ---------------------------------------------------------------------------

def _adj_tile(ref):
    """Adjacency tile as a bf16 MXU operand (int8 dequant runs on the VPU,
    hidden under the adjacency DMA)."""
    a = ref[...]
    if jnp.issubdtype(a.dtype, jnp.integer):
        a = a.astype(jnp.float32)
    return a.astype(jnp.bfloat16)


def feat1_kernel(x_ref, w1f_ref, w1s_ref, of_ref, os_ref):
    # XW1f = x @ W1f ; XW1s = x @ W1s   (x is lane-dense: nfeat padded to 128)
    x = x_ref[...]
    of_ref[...] = jnp.dot(x, w1f_ref[...],
                          preferred_element_type=jnp.float32).astype(of_ref.dtype)
    os_ref[...] = jnp.dot(x, w1s_ref[...],
                          preferred_element_type=jnp.float32).astype(os_ref.dtype)


def make_agg1_kernel(resident, tk):
    """Hop-1 aggregation (+ per-row dequant scale, bias, ReLU) fused with the
    layer-2 feature transform.  Separate f/s branches -> no lane slicing."""

    def kernel(fadj_ref, sadj_ref, fs_ref, ss_ref, xwf_ref, xws_ref,
               b1f_ref, b1s_ref, w2f_ref, w2s_ref,
               of_ref, os_ref, accf_ref, accs_ref):
        k = pl.program_id(1)

        @pl.when(k == 0)
        def _init():
            accf_ref[...] = jnp.zeros_like(accf_ref)
            accs_ref[...] = jnp.zeros_like(accs_ref)

        if resident:
            # whole XW1 lives in VMEM (constant index map); slice the K chunk.
            r0 = pl.multiple_of(k * tk, tk)
            xwf = xwf_ref[pl.ds(r0, tk), :]
            xws = xws_ref[pl.ds(r0, tk), :]
        else:
            xwf = xwf_ref[...]
            xws = xws_ref[...]

        accf_ref[...] += jnp.dot(_adj_tile(fadj_ref), xwf,
                                 preferred_element_type=jnp.float32)
        accs_ref[...] += jnp.dot(_adj_tile(sadj_ref), xws,
                                 preferred_element_type=jnp.float32)

        @pl.when(k == pl.num_programs(1) - 1)
        def _finalize():
            hf = jnp.maximum(accf_ref[...] * fs_ref[...] + b1f_ref[...], 0.0)
            hs = jnp.maximum(accs_ref[...] * ss_ref[...] + b1s_ref[...], 0.0)
            of_ref[...] = jnp.dot(hf.astype(w2f_ref.dtype), w2f_ref[...],
                                  preferred_element_type=jnp.float32
                                  ).astype(of_ref.dtype)
            os_ref[...] = jnp.dot(hs.astype(w2s_ref.dtype), w2s_ref[...],
                                  preferred_element_type=jnp.float32
                                  ).astype(os_ref.dtype)

    return kernel


def make_agg2_kernel(resident, tk):
    """Hop-2 aggregation (+ scale, bias) fused with the MLP head
    (out = z@Wz + H2f@We + H2s@Wx + bm), class dim lane-dense (128)."""

    def kernel(fadj_ref, sadj_ref, fs_ref, ss_ref, xwf_ref, xws_ref, z_ref,
               b2f_ref, b2s_ref, wz_ref, we_ref, wx_ref, bm_ref,
               out_ref, accf_ref, accs_ref):
        k = pl.program_id(1)

        @pl.when(k == 0)
        def _init():
            accf_ref[...] = jnp.zeros_like(accf_ref)
            accs_ref[...] = jnp.zeros_like(accs_ref)

        if resident:
            r0 = pl.multiple_of(k * tk, tk)
            xwf = xwf_ref[pl.ds(r0, tk), :]
            xws = xws_ref[pl.ds(r0, tk), :]
        else:
            xwf = xwf_ref[...]
            xws = xws_ref[...]

        accf_ref[...] += jnp.dot(_adj_tile(fadj_ref), xwf,
                                 preferred_element_type=jnp.float32)
        accs_ref[...] += jnp.dot(_adj_tile(sadj_ref), xws,
                                 preferred_element_type=jnp.float32)

        @pl.when(k == pl.num_programs(1) - 1)
        def _finalize():
            h2f = accf_ref[...] * fs_ref[...] + b2f_ref[...]
            h2s = accs_ref[...] * ss_ref[...] + b2s_ref[...]
            out = (jnp.dot(z_ref[...], wz_ref[...],
                           preferred_element_type=jnp.float32)
                   + jnp.dot(h2f.astype(we_ref.dtype), we_ref[...],
                             preferred_element_type=jnp.float32)
                   + jnp.dot(h2s.astype(wx_ref.dtype), wx_ref[...],
                             preferred_element_type=jnp.float32)
                   + bm_ref[...])
            out_ref[...] = out

    return kernel


# ---------------------------------------------------------------------------
# Wrapper: one-time prepare + per-call apply
# ---------------------------------------------------------------------------

_VMEM_LIMIT = 48 * 1024 * 1024      # under v7x's 64 MiB physical, with headroom
_RESIDENT_BUDGET = 4 * 1024 * 1024  # per stage, both XW branches (single buffer)


def mgcn_prepare(x, sadj, fadj, params, *, tm_max=512, tk_max=2048,
                 quantize_adj=True):
    """One-time (amortizable) padding / casting / quantization.

    Everything HBM-heavy that is per-graph rather than per-call — in particular
    the cast + pad (+ int8 quantization) of the two NxN adjacencies — happens
    here so repeated forward calls only pay for the kernels themselves.
    """
    n, nfeat = x.shape
    nhid1 = params["w1f"].shape[1]
    nhid2 = params["w2f"].shape[1]
    nclass = params["bm"].shape[-1]

    adj_bytes = 1 if quantize_adj else 2
    npad, tm, tk = _choose_tiling(n, tm_max, tk_max, adj_bytes)
    fpad = _round_up(max(nfeat, 128), 128)     # lane-dense x / W1 loads
    cpad = _round_up(max(nclass, 128), 128)    # lane-dense output stores

    cdt = jnp.bfloat16                         # MXU operand dtype (f32 accum)

    def pad2(a, rows, cols, dtype):
        a = jnp.asarray(a, dtype)
        return jnp.pad(a, ((0, rows - a.shape[0]), (0, cols - a.shape[1])))

    if quantize_adj:
        fq, fs = _quantize_rows_int8(fadj)
        sq, ss = _quantize_rows_int8(sadj)
        fadj_p = pad2(fq, npad, npad, jnp.int8)
        sadj_p = pad2(sq, npad, npad, jnp.int8)
        fs_p = pad2(fs, npad, 1, jnp.float32)
        ss_p = pad2(ss, npad, 1, jnp.float32)
    else:
        fadj_p = pad2(fadj, npad, npad, cdt)
        sadj_p = pad2(sadj, npad, npad, cdt)
        ones = jnp.ones((npad, 1), jnp.float32)
        fs_p, ss_p = ones, ones

    arrays = dict(
        fadj=fadj_p, sadj=sadj_p, fscale=fs_p, sscale=ss_p,
        x=pad2(x, npad, fpad, cdt),
        z=pad2(params["z"], npad, nhid2, cdt),
        w1f=pad2(params["w1f"], fpad, nhid1, cdt),
        w1s=pad2(params["w1s"], fpad, nhid1, cdt),
        b1f=jnp.asarray(params["b1f"], jnp.float32).reshape(1, nhid1),
        b1s=jnp.asarray(params["b1s"], jnp.float32).reshape(1, nhid1),
        w2f=jnp.asarray(params["w2f"], cdt),
        w2s=jnp.asarray(params["w2s"], cdt),
        b2f=jnp.asarray(params["b2f"], jnp.float32).reshape(1, nhid2),
        b2s=jnp.asarray(params["b2s"], jnp.float32).reshape(1, nhid2),
        wz=pad2(params["wm_z"], nhid2, cpad, cdt),
        we=pad2(params["wm_e2"], nhid2, cpad, cdt),
        wx=pad2(params["wm_xc"], nhid2, cpad, cdt),
        bm=pad2(params["bm"], 1, cpad, jnp.float32),
    )
    cfg = dict(n=n, npad=npad, tm=tm, tk=tk, fpad=fpad, cpad=cpad,
               nhid1=nhid1, nhid2=nhid2, nclass=nclass)
    return arrays, cfg


def mgcn_apply(arrays, cfg, *, resident_budget_bytes=_RESIDENT_BUDGET):
    """Run the three Pallas stages on prepared inputs; returns MGCN's 7-tuple."""
    npad, tm, tk = cfg["npad"], cfg["tm"], cfg["tk"]
    fpad, cpad = cfg["fpad"], cfg["cpad"]
    nhid1, nhid2 = cfg["nhid1"], cfg["nhid2"]
    gm, gk = npad // tm, npad // tk

    cp1 = pltpu.CompilerParams(dimension_semantics=("parallel",),
                               vmem_limit_bytes=_VMEM_LIMIT)
    cp2 = pltpu.CompilerParams(dimension_semantics=("parallel", "arbitrary"),
                               vmem_limit_bytes=_VMEM_LIMIT)

    def adj_spec():
        return pl.BlockSpec((tm, tk), lambda m, k: (m, k))

    def scale_spec():
        return pl.BlockSpec((tm, 1), lambda m, k: (m, 0))

    def xw_spec(nh, resident):
        if resident:   # full array resident in VMEM, fetched once (constant map)
            return pl.BlockSpec((npad, nh), lambda m, k: (0, 0))
        return pl.BlockSpec((tk, nh), lambda m, k: (k, 0))

    # --- stage 1: XW1f = x @ W1f, XW1s = x @ W1s -----------------------------
    xw1f, xw1s = pl.pallas_call(
        feat1_kernel,
        out_shape=(jax.ShapeDtypeStruct((npad, nhid1), jnp.bfloat16),
                   jax.ShapeDtypeStruct((npad, nhid1), jnp.bfloat16)),
        grid=(gm,),
        in_specs=[pl.BlockSpec((tm, fpad), lambda m: (m, 0)),
                  pl.BlockSpec((fpad, nhid1), lambda m: (0, 0)),
                  pl.BlockSpec((fpad, nhid1), lambda m: (0, 0))],
        out_specs=(pl.BlockSpec((tm, nhid1), lambda m: (m, 0)),
                   pl.BlockSpec((tm, nhid1), lambda m: (m, 0))),
        compiler_params=cp1,
    )(arrays["x"], arrays["w1f"], arrays["w1s"])

    # --- stage 2: hop-1 aggregation (+bias, relu) + layer-2 transform --------
    res1 = 2 * npad * nhid1 * 2 <= resident_budget_bytes
    xw2f, xw2s = pl.pallas_call(
        make_agg1_kernel(res1, tk),
        out_shape=(jax.ShapeDtypeStruct((npad, nhid2), jnp.bfloat16),
                   jax.ShapeDtypeStruct((npad, nhid2), jnp.bfloat16)),
        grid=(gm, gk),
        in_specs=[adj_spec(), adj_spec(), scale_spec(), scale_spec(),
                  xw_spec(nhid1, res1), xw_spec(nhid1, res1),
                  pl.BlockSpec((1, nhid1), lambda m, k: (0, 0)),
                  pl.BlockSpec((1, nhid1), lambda m, k: (0, 0)),
                  pl.BlockSpec((nhid1, nhid2), lambda m, k: (0, 0)),
                  pl.BlockSpec((nhid1, nhid2), lambda m, k: (0, 0))],
        out_specs=(pl.BlockSpec((tm, nhid2), lambda m, k: (m, 0)),
                   pl.BlockSpec((tm, nhid2), lambda m, k: (m, 0))),
        scratch_shapes=[pltpu.VMEM((tm, nhid1), jnp.float32),
                        pltpu.VMEM((tm, nhid1), jnp.float32)],
        compiler_params=cp2,
    )(arrays["fadj"], arrays["sadj"], arrays["fscale"], arrays["sscale"],
      xw1f, xw1s, arrays["b1f"], arrays["b1s"], arrays["w2f"], arrays["w2s"])

    # --- stage 3: hop-2 aggregation (+bias) + fused MLP head ------------------
    res2 = 2 * npad * nhid2 * 2 <= resident_budget_bytes
    out_p = pl.pallas_call(
        make_agg2_kernel(res2, tk),
        out_shape=jax.ShapeDtypeStruct((npad, cpad), jnp.float32),
        grid=(gm, gk),
        in_specs=[adj_spec(), adj_spec(), scale_spec(), scale_spec(),
                  xw_spec(nhid2, res2), xw_spec(nhid2, res2),
                  pl.BlockSpec((tm, nhid2), lambda m, k: (m, 0)),
                  pl.BlockSpec((1, nhid2), lambda m, k: (0, 0)),
                  pl.BlockSpec((1, nhid2), lambda m, k: (0, 0)),
                  pl.BlockSpec((nhid2, cpad), lambda m, k: (0, 0)),
                  pl.BlockSpec((nhid2, cpad), lambda m, k: (0, 0)),
                  pl.BlockSpec((nhid2, cpad), lambda m, k: (0, 0)),
                  pl.BlockSpec((1, cpad), lambda m, k: (0, 0))],
        out_specs=pl.BlockSpec((tm, cpad), lambda m, k: (m, 0)),
        scratch_shapes=[pltpu.VMEM((tm, nhid2), jnp.float32),
                        pltpu.VMEM((tm, nhid2), jnp.float32)],
        compiler_params=cp2,
    )(arrays["fadj"], arrays["sadj"], arrays["fscale"], arrays["sscale"],
      xw2f, xw2s, arrays["z"], arrays["b2f"], arrays["b2s"],
      arrays["wz"], arrays["we"], arrays["wx"], arrays["bm"])

    output = out_p[:cfg["n"], :cfg["nclass"]]
    return (output, None, None, None, None, None, None)


def mgcn_forward(x, sadj, fadj, params, *, tm_max=512, tk_max=2048,
                 quantize_adj=True, resident_budget_bytes=_RESIDENT_BUDGET):
    """One-shot convenience wrapper.  For repeated forward passes on the same
    graph, call mgcn_prepare once and mgcn_apply per call (that is the point
    of the split)."""
    arrays, cfg = mgcn_prepare(x, sadj, fadj, params, tm_max=tm_max,
                               tk_max=tk_max, quantize_adj=quantize_adj)
    return mgcn_apply(arrays, cfg, resident_budget_bytes=resident_budget_bytes)


# ---------------------------------------------------------------------------
# Parameter init + pure-JAX reference
# ---------------------------------------------------------------------------

def init_params(key, N, nfeat, nhid1, nhid2, nclass):
    ks = jax.random.split(key, 16)

    def u(k, shape, fan):
        bound = 1.0 / jnp.sqrt(float(fan))
        return jax.random.uniform(k, shape, jnp.float32, -bound, bound)

    return {
        # GRAPH "z" parameter (stands in for the checkpoint-loaded embedding)
        "z": jax.random.normal(ks[0], (N, nhid2), jnp.float32) * 0.1,
        # SGCN1 (applied with fadj)
        "w1f": u(ks[1], (nfeat, nhid1), nhid1),
        "b1f": u(ks[2], (1, nhid1), nhid1),
        "w2f": u(ks[3], (nhid1, nhid2), nhid2),
        "b2f": u(ks[4], (1, nhid2), nhid2),
        # SGCN2 (applied with sadj)
        "w1s": u(ks[5], (nfeat, nhid1), nhid1),
        "b1s": u(ks[6], (1, nhid1), nhid1),
        "w2s": u(ks[7], (nhid1, nhid2), nhid2),
        "b2s": u(ks[8], (1, nhid2), nhid2),
        # MLP: Linear(3*nhid2, nclass); weight stored [in, out], pre-split along
        # the input dim to match the [z, emb2, Xcom] concat.
        "wm_z": u(ks[9], (nhid2, nclass), 3 * nhid2),
        "wm_e2": u(ks[10], (nhid2, nclass), 3 * nhid2),
        "wm_xc": u(ks[11], (nhid2, nclass), 3 * nhid2),
        "bm": u(ks[12], (1, nclass), 3 * nhid2),
    }


def mgcn_reference(x, sadj, fadj, p):
    def gcn(adj, w1, b1, w2, b2):
        h = jnp.maximum(adj @ (x @ w1) + b1, 0.0)
        return adj @ (h @ w2) + b2
    emb2 = gcn(fadj, p["w1f"], p["b1f"], p["w2f"], p["b2f"])
    xcom = gcn(sadj, p["w1s"], p["b1s"], p["w2s"], p["b2s"])
    return p["z"] @ p["wm_z"] + emb2 @ p["wm_e2"] + xcom @ p["wm_xc"] + p["bm"]


# ---------------------------------------------------------------------------
# Test
# ---------------------------------------------------------------------------

if __name__ == "__main__":
    N, nfeat, nhid1, nhid2, nclass = 512, 64, 32, 16, 4

    key = jax.random.PRNGKey(0)
    k_x, k_s, k_f, k_p = jax.random.split(key, 4)

    x = jax.random.normal(k_x, (N, nfeat), jnp.float32)

    # symmetric, row-normalized-ish adjacency matrices
    def make_adj(k):
        a = jax.random.uniform(k, (N, N), jnp.float32)
        a = (a + a.T) / 2.0 + jnp.eye(N, dtype=jnp.float32)
        return a / jnp.sum(a, axis=1, keepdims=True)

    sadj = make_adj(k_s)
    fadj = make_adj(k_f)

    params = init_params(k_p, N, nfeat, nhid1, nhid2, nclass)

    ref = mgcn_reference(x, sadj, fadj, params)
    scale = float(jnp.max(jnp.abs(ref))) + 1e-6

    # main path: int8 adjacency (per-row scales) + resident XW slabs.
    # N=512 -> npad=512, tm=256 (gm=2 for v7x's two cores), tk=512 (gk=1).
    outs = mgcn_forward(x, sadj, fadj, params)
    out = jax.block_until_ready(outs[0])
    assert out.shape == (N, nclass)
    assert bool(jnp.all(jnp.isfinite(out)))
    err = float(jnp.max(jnp.abs(out - ref)))
    assert err <= 0.05 * scale + 2e-3, ("quantized path", err, scale)

    # fallback path: bf16 adjacency + per-k XW slab streaming (exercises the
    # non-quantized / non-resident code path as well).
    arrays, cfg = mgcn_prepare(x, sadj, fadj, params, quantize_adj=False)
    outs2 = mgcn_apply(arrays, cfg, resident_budget_bytes=0)
    out2 = jax.block_until_ready(outs2[0])
    err2 = float(jnp.max(jnp.abs(out2 - ref)))
    assert err2 <= 0.05 * scale + 2e-3, ("bf16 path", err2, scale)

    print("KERNEL_OK")
</pallas_src>

<mosaic_0001>
module attributes {stable_mosaic.version = 11 : i64} {
  func.func @feat1_kernel(%arg0: i32, %arg1: memref<256x128xbf16, #tpu.memory_space<vmem>>, %arg2: memref<128x32xbf16, #tpu.memory_space<vmem>>, %arg3: memref<128x32xbf16, #tpu.memory_space<vmem>>, %arg4: memref<256x32xbf16, #tpu.memory_space<vmem>>, %arg5: memref<256x32xbf16, #tpu.memory_space<vmem>>) attributes {dimension_semantics = [#tpu.dimension_semantics<parallel>], iteration_bounds = array<i64: 2>, scalar_prefetch = 0 : i64, scratch_operands = 0 : i64, tpu.core_type = #tpu.core_type<tc>, window_params = [{transform_indices = @transform_0, window_bounds = array<i64: 256, 128>}, {pipeline_mode = #tpu.pipeline_mode<synchronous>, transform_indices = @transform_1, window_bounds = array<i64: 128, 32>}, {pipeline_mode = #tpu.pipeline_mode<synchronous>, transform_indices = @transform_2, window_bounds = array<i64: 128, 32>}, {transform_indices = @transform_3, window_bounds = array<i64: 256, 32>}, {transform_indices = @transform_4, window_bounds = array<i64: 256, 32>}]} {
    %c0 = arith.constant 0 : index
    %c0_0 = arith.constant 0 : index
    %0 = vector.load %arg1[%c0, %c0_0] : memref<256x128xbf16, #tpu.memory_space<vmem>>, vector<256x128xbf16>
    %c0_1 = arith.constant 0 : index
    %c0_2 = arith.constant 0 : index
    %1 = vector.load %arg2[%c0_1, %c0_2] : memref<128x32xbf16, #tpu.memory_space<vmem>>, vector<128x32xbf16>
    %cst = arith.constant dense<0.000000e+00> : vector<256x32xf32>
    %2 = tpu.matmul %0, %1, %cst {dimension_numbers = #tpu.dot_dimension_numbers<[1], [0], [0], [1], [0, 0, 1, 1], [], []>} : vector<256x128xbf16>, vector<128x32xbf16>, vector<256x32xf32> -> vector<256x32xf32>
    %3 = arith.truncf %2 : vector<256x32xf32> to vector<256x32xbf16>
    %c0_3 = arith.constant 0 : index
    %c0_4 = arith.constant 0 : index
    %4 = vector.load %arg4[%c0_3, %c0_4] : memref<256x32xbf16, #tpu.memory_space<vmem>>, vector<256x32xbf16>
    tpu.vector_store %arg4[%c0_3, %c0_4], %3 {strides = array<i32>} : memref<256x32xbf16, #tpu.memory_space<vmem>>, vector<256x32xbf16>,
    %c0_5 = arith.constant 0 : index
    %c0_6 = arith.constant 0 : index
    %5 = vector.load %arg3[%c0_5, %c0_6] : memref<128x32xbf16, #tpu.memory_space<vmem>>, vector<128x32xbf16>
    %cst_7 = arith.constant dense<0.000000e+00> : vector<256x32xf32>
    %6 = tpu.matmul %0, %5, %cst_7 {dimension_numbers = #tpu.dot_dimension_numbers<[1], [0], [0], [1], [0, 0, 1, 1], [], []>} : vector<256x128xbf16>, vector<128x32xbf16>, vector<256x32xf32> -> vector<256x32xf32>
    %7 = arith.truncf %6 : vector<256x32xf32> to vector<256x32xbf16>
    %c0_8 = arith.constant 0 : index
    %c0_9 = arith.constant 0 : index
    %8 = vector.load %arg5[%c0_8, %c0_9] : memref<256x32xbf16, #tpu.memory_space<vmem>>, vector<256x32xbf16>
    tpu.vector_store %arg5[%c0_8, %c0_9], %7 {strides = array<i32>} : memref<256x32xbf16, #tpu.memory_space<vmem>>, vector<256x32xbf16>,
    return
  }
  func.func @transform_0(%arg0: i32) -> (i32, i32) {
    %c0_i32 = arith.constant 0 : i32
    %c0_i32_0 = arith.constant 0 : i32
    return %arg0, %c0_i32 : i32, i32
  }
  func.func @transform_1(%arg0: i32) -> (i32, i32) {
    %c0_i32 = arith.constant 0 : i32
    %c0_i32_0 = arith.constant 0 : i32
    %c0_i32_1 = arith.constant 0 : i32
    return %c0_i32, %c0_i32_0 : i32, i32
  }
  func.func @transform_2(%arg0: i32) -> (i32, i32) {
    %c0_i32 = arith.constant 0 : i32
    %c0_i32_0 = arith.constant 0 : i32
    %c0_i32_1 = arith.constant 0 : i32
    return %c0_i32, %c0_i32_0 : i32, i32
  }
  func.func @transform_3(%arg0: i32) -> (i32, i32) {
    %c0_i32 = arith.constant 0 : i32
    %c0_i32_0 = arith.constant 0 : i32
    return %arg0, %c0_i32 : i32, i32
  }
  func.func @transform_4(%arg0: i32) -> (i32, i32) {
    %c0_i32 = arith.constant 0 : i32
    %c0_i32_0 = arith.constant 0 : i32
    return %arg0, %c0_i32 : i32, i32
  }
}

</mosaic_0001>

<llo_original>
// kernel: tpu_custom_call.1
$region0: #{tpu_custom_call.1}
  #allocation0 [shape = 'u32[]', space=smem, size = 0x4, offset = 0x4, fixed_abs, tag = 'smem constant byte address 0x4 - core index']
  #allocation1 [shape = 'u32[144,128]{1,0:T(1,128)}', space=vmem, size = 0x12000, scoped, tag = 'internal scratch']
  %s0 = inlined_call_operand.hbm [shape: bf16[512,128], index: 0, kind: input, shape index: {}]
  %s1 = inlined_call_operand.vmem [shape: bf16[128,32], index: 1, kind: input, shape index: {}]
  %s2 = inlined_call_operand.vmem [shape: bf16[128,32], index: 2, kind: input, shape index: {}]
  %s3 = inlined_call_operand.vmem [shape: bf16[512,32], index: 3, kind: output, shape index: {0}]
  %s4 = inlined_call_operand.vmem [shape: bf16[512,32], index: 4, kind: output, shape index: {1}]
  %5 = xla_tuple %s3, %s4
  %s6 = sld [smem:[#allocation0]]
  $region57: #{tpu_custom_call.1} parent=0
    _
  %s8 = ssub.s32 1, %s6
  %s9 = scalar_select 0, %s8, %s6
  $region1: #{tpu_custom_call.1} parent=0
    #allocation2 [shape = 'u8[131072]{0}', space=vmem, size = 0x20000, scoped, tag = 'input window, operand 0']
    #allocation3 [shape = 's32[2]{0}', space=sflag, size = 0x8, scoped, tag = 'scoped memory for tpu_custom_call.1']
    %10 = vsyncpa [#allocation3], 0
    %s11 = scalar_lea.sflag [#allocation3], 1
    %12 = vsyncpa %s11, 0
    loop: start=0, step=1, limit=4
    $region2: #{tpu_custom_call.1} parent=1 // loop_pre_header
      _
    $region3: #{tpu_custom_call.1} parent=1 // loop_header
      %s14 = sphi 0, %s18
      %p15 = scmp.ge.s32.totalorder %s14, 4
      %s24 = sphi 0, %s26
      %s27 = sphi 0, %s24
      %s28 = sphi 0, %s27
      %s44 = sphi 0, %s28
      %s48 = sphi 0, %s48
      %s50 = sphi 0, %s48
      %s51 = sphi 0, %s50
      %s65 = sphi 0, %s51
      %s69 = sphi 0, %s69
      %s71 = sphi 0, %s69
      %s72 = sphi 0, %s71
      %s86 = sphi 0, %s72
      %s92 = sphi 0, %s94
      %s95 = sphi 0, %s92
      %s96 = sphi 0, %s95
      %s112 = sphi 0, %s96
      %s118 = sphi 0, %s120
      %s121 = sphi 0, %s118
      %s122 = sphi 0, %s121
      %s138 = sphi 0, %s122
    $region4: #{tpu_custom_call.1} parent=1 // loop_header_branch
      %17 = sbr.rel (%p15) target = $region8
    $region5: #{tpu_custom_call.1} parent=1 // loop_body
      %s19 = ssub.s32 %s14, 1
      %s20 = ssub.s32 %s14, 2
      %s21 = sadd.s32 %s14, 1
      %s22 = ssub.s32 %s14, %s21
      %p23 = scmp.eq.s32.totalorder %s22, 0
      %s25 = sadd.s32 %s24, 1
      %s26 = scalar_select %p23, %s24, %s25
      %p29 = pneg %p23
      %p30 = scmp.eq.s32.totalorder %s14, 1
      %p31 = por %p29, %p30
      %p32 = scmp.ne.s32.totalorder %s24, %s27
      %p33 = scmp.eq.s32.totalorder %s14, 0
      %p34 = por %p32, %p33
      %p35 = scmp.ne.s32.totalorder %s24, %s27
      %p36 = scmp.eq.s32.totalorder %s19, 1
      %p37 = por %p35, %p36
      %p38 = scmp.ne.s32.totalorder %s27, %s28
      %p39 = scmp.eq.s32.totalorder %s19, 0
      %p40 = por %p38, %p39
      %p41 = scmp.ne.s32.totalorder %s27, %s28
      %p42 = scmp.eq.s32.totalorder %s20, 1
      %p43 = por %p41, %p42
      %p45 = scmp.ne.s32.totalorder %s28, %s44
      %p46 = scmp.eq.s32.totalorder %s20, 0
      %p47 = por %p45, %p46
      %s49 = sadd.s32 %s48, 1
      %p52 = scmp.eq.s32.totalorder %s14, 1
      %p53 = scmp.ne.s32.totalorder %s48, %s50
      %p54 = scmp.eq.s32.totalorder %s14, 0
      %p55 = por %p53, %p54
      %p56 = scmp.ne.s32.totalorder %s48, %s50
      %p57 = scmp.eq.s32.totalorder %s19, 1
      %p58 = por %p56, %p57
      %p59 = scmp.ne.s32.totalorder %s50, %s51
      %p60 = scmp.eq.s32.totalorder %s19, 0
      %p61 = por %p59, %p60
      %p62 = scmp.ne.s32.totalorder %s50, %s51
      %p63 = scmp.eq.s32.totalorder %s20, 1
      %p64 = por %p62, %p63
      %p66 = scmp.ne.s32.totalorder %s51, %s65
      %p67 = scmp.eq.s32.totalorder %s20, 0
      %p68 = por %p66, %p67
      %s70 = sadd.s32 %s69, 1
      %p73 = scmp.eq.s32.totalorder %s14, 1
      %p74 = scmp.ne.s32.totalorder %s69, %s71
      %p75 = scmp.eq.s32.totalorder %s14, 0
      %p76 = por %p74, %p75
      %p77 = scmp.ne.s32.totalorder %s69, %s71
      %p78 = scmp.eq.s32.totalorder %s19, 1
      %p79 = por %p77, %p78
      %p80 = scmp.ne.s32.totalorder %s71, %s72
      %p81 = scmp.eq.s32.totalorder %s19, 0
      %p82 = por %p80, %p81
      %p83 = scmp.ne.s32.totalorder %s71, %s72
      %p84 = scmp.eq.s32.totalorder %s20, 1
      %p85 = por %p83, %p84
      %p87 = scmp.ne.s32.totalorder %s72, %s86
      %p88 = scmp.eq.s32.totalorder %s20, 0
      %p89 = por %p87, %p88
      %s90 = ssub.s32 %s14, %s21
      %p91 = scmp.eq.s32.totalorder %s90, 0
      %s93 = sadd.s32 %s92, 1
      %s94 = scalar_select %p91, %s92, %s93
      %p97 = pneg %p91
      %p98 = scmp.eq.s32.totalorder %s14, 1
      %p99 = por %p97, %p98
      %p100 = scmp.ne.s32.totalorder %s92, %s95
      %p101 = scmp.eq.s32.totalorder %s14, 0
      %p102 = por %p100, %p101
      %p103 = scmp.ne.s32.totalorder %s92, %s95
      %p104 = scmp.eq.s32.totalorder %s19, 1
      %p105 = por %p103, %p104
      %p106 = scmp.ne.s32.totalorder %s95, %s96
      %p107 = scmp.eq.s32.totalorder %s19, 0
      %p108 = por %p106, %p107
      %p109 = scmp.ne.s32.totalorder %s95, %s96
      %p110 = scmp.eq.s32.totalorder %s20, 1
      %p111 = por %p109, %p110
      %p113 = scmp.ne.s32.totalorder %s96, %s112
      %p114 = scmp.eq.s32.totalorder %s20, 0
      %p115 = por %p113, %p114
      %s116 = ssub.s32 %s14, %s21
      %p117 = scmp.eq.s32.totalorder %s116, 0
      %s119 = sadd.s32 %s118, 1
      %s120 = scalar_select %p117, %s118, %s119
      %p123 = pneg %p117
      %p124 = scmp.eq.s32.totalorder %s14, 1
      %p125 = por %p123, %p124
      %p126 = scmp.ne.s32.totalorder %s118, %s121
      %p127 = scmp.eq.s32.totalorder %s14, 0
      %p128 = por %p126, %p127
      %p129 = scmp.ne.s32.totalorder %s118, %s121
      %p130 = scmp.eq.s32.totalorder %s19, 1
      %p131 = por %p129, %p130
      %p132 = scmp.ne.s32.totalorder %s121, %s122
      %p133 = scmp.eq.s32.totalorder %s19, 0
      %p134 = por %p132, %p133
      %p135 = scmp.ne.s32.totalorder %s121, %s122
      %p136 = scmp.eq.s32.totalorder %s20, 1
      %p137 = por %p135, %p136
      %p139 = scmp.ne.s32.totalorder %s122, %s138
      %p140 = scmp.eq.s32.totalorder %s20, 0
      %p141 = por %p139, %p140
      %p142 = scmp.le.s32.totalorder 1, %s14
      %p143 = scmp.lt.s32.totalorder %s14, 3
      %p144 = pnand %p142, %p143
      %p145 = pneg %p144
      // Predicated region
      $region9: #{tpu_custom_call.1} parent=5 // pred_check
        _
      $region10: #{tpu_custom_call.1} parent=5 // pred_check_branch
        %147 = sbr.rel (%p144) target = $region12
      $region11: #{tpu_custom_call.1} parent=5 // pred_region
        %s148 = ssub.s32 %s14, 1
        // Predicated region
        $region13: #{tpu_custom_call.1} parent=11 // pred_check
          %p149 = pneg %p61
        $region14: #{tpu_custom_call.1} parent=11 // pred_check_branch
          %151 = sbr.rel (%p149) target = $region16
        $region15: #{tpu_custom_call.1} parent=11 // pred_region
          _
        $region16: #{tpu_custom_call.1} parent=11 // pred_fallthru
          _
        // Predicated region
        $region17: #{tpu_custom_call.1} parent=11 // pred_check
          %p152 = pneg %p82
        $region18: #{tpu_custom_call.1} parent=11 // pred_check_branch
          %154 = sbr.rel (%p152) target = $region20
        $region19: #{tpu_custom_call.1} parent=11 // pred_region
          _
        $region20: #{tpu_custom_call.1} parent=11 // pred_fallthru
          _
      $region12: #{tpu_custom_call.1} parent=5 // pred_fallthru
        _
      %p155 = scmp.lt.s32.totalorder %s14, 2
      // Predicated region
      $region21: #{tpu_custom_call.1} parent=5 // pred_check
        %p156 = pneg %p155
      $region22: #{tpu_custom_call.1} parent=5 // pred_check_branch
        %158 = sbr.rel (%p156) target = $region24
      $region23: #{tpu_custom_call.1} parent=5 // pred_region
        // Predicated region
        $region25: #{tpu_custom_call.1} parent=23 // pred_check
          %p159 = pneg %p34
        $region26: #{tpu_custom_call.1} parent=23 // pred_check_branch
          %161 = sbr.rel (%p159) target = $region28
        $region27: #{tpu_custom_call.1} parent=23 // pred_region
          %s162 = sand.u32 %s24, 1
          %s163 = scalar_lea.sflag [#allocation3], %s162
          %s164 = sand.u32 %s24, 1
          %s165 = smul.addr %s164, 128
          %s166 = scalar_lea.vmem [#allocation2], %s165
          %s167 = smul.u32 32, %s14
          %s169 = ssub.s32 2048, 2048
          %170 = vsyncadd %s163, %s169
          %s171 = smul.addr %s167, 64
          %s172 = scalar_lea.hbm %s0, %s171
          %s173 = sshll.u32 %s166, 4
          %s174 = int_to_ptr.vmem [resolvable:$true] %s173
          %179 = dma.hbm_to_vmem [thread:$0]  %s172, 2048, %s174, %s163, 64, 64, 4
        $region28: #{tpu_custom_call.1} parent=23 // pred_fallthru
          _
      $region24: #{tpu_custom_call.1} parent=5 // pred_fallthru
        _
      %p180 = scmp.le.s32.totalorder 1, %s14
      %p181 = scmp.lt.s32.totalorder %s14, 3
      %p182 = pnand %p180, %p181
      %p183 = pneg %p182
      // Predicated region
      $region29: #{tpu_custom_call.1} parent=5 // pred_check
        _
      $region30: #{tpu_custom_call.1} parent=5 // pred_check_branch
        %185 = sbr.rel (%p182) target = $region32
      $region31: #{tpu_custom_call.1} parent=5 // pred_region
        %s186 = ssub.s32 %s14, 1
        %s187 = sand.u32 %s27, 1
        %s188 = scalar_lea.sflag [#allocation3], %s187
        %s189 = sand.u32 %s27, 1
        %s190 = smul.addr %s189, 128
        %s191 = scalar_lea.vmem [#allocation2], %s190
        // Predicated region
        $region33: #{tpu_custom_call.1} parent=31 // pred_check
          %p192 = pneg %p40
        $region34: #{tpu_custom_call.1} parent=31 // pred_check_branch
          %194 = sbr.rel (%p192) target = $region36
        $region35: #{tpu_custom_call.1} parent=31 // pred_region
          %195 = dma.done %s188, 2048
        $region36: #{tpu_custom_call.1} parent=31 // pred_fallthru
          _
        %s196 = sand.u32 %s27, 1
        %s197 = scalar_lea.sflag [#allocation3], %s196
        %s198 = sand.u32 %s27, 1
        %s199 = smul.addr %s198, 128
        %s200 = scalar_lea.vmem [#allocation2], %s199
        %p201 = pneg %p40
        %p202 = pneg %p37
        %p203 = pneg %p61
        %p204 = pneg %p58
        %p205 = pneg %p82
        %p206 = pneg %p79
        %p207 = pneg %p108
        %p208 = pneg %p105
        %s209 = smul.u32 32, %s19
        %p210 = scmp.lt.s32.totalorder %s209, 63
        %s211 = scalar_select %p210, %s209, 63
        %s212 = smul.addr %s211, 4
        %s213 = scalar_lea.vmem %s3, %s212
        %p214 = pneg %p134
        %p215 = pneg %p131
        %s216 = smul.u32 32, %s19
        %p217 = scmp.lt.s32.totalorder %s216, 63
        %s218 = scalar_select %p217, %s216, 63
        %s219 = smul.addr %s218, 4
        %s220 = scalar_lea.vmem %s4, %s219
        %s221 = smul.u32 32, %s19
        %s222 = smul.u32 32, %s19
        %p223 = scmp.lt.s32.totalorder %s222, 63
        %s224 = scalar_select %p223, %s222, 63
        %s225 = smul.addr %s224, 4
        %s226 = scalar_lea.vmem %s3, %s225
        %s227 = smul.u32 32, %s19
        %s228 = smul.u32 32, %s19
        %p229 = scmp.lt.s32.totalorder %s228, 63
        %s230 = scalar_select %p229, %s228, 63
        %s231 = smul.addr %s230, 4
        %s232 = scalar_lea.vmem %s4, %s231
        %s233 = smul.u32 32, %s19
        %v235 = vld [vmem:[%s191] sm:$0xf]
        %v236 = vld [vmem:[%s191 + $0x4] sm:$0xf]
        %v237 = vld [vmem:[%s191 + $0x8] sm:$0xf]
        %v238 = vld [vmem:[%s191 + $0xc] sm:$0xf]
        %v239 = vld [vmem:[%s191 + $0x10] sm:$0xf]
        %v240 = vld [vmem:[%s191 + $0x14] sm:$0xf]
        %v241 = vld [vmem:[%s191 + $0x18] sm:$0xf]
        %v242 = vld [vmem:[%s191 + $0x1c] sm:$0xf]
        %v243 = vld [vmem:[%s191 + $0x20] sm:$0xf]
        %v244 = vld [vmem:[%s191 + $0x24] sm:$0xf]
        %v245 = vld [vmem:[%s191 + $0x28] sm:$0xf]
        %v246 = vld [vmem:[%s191 + $0x2c] sm:$0xf]
        %v247 = vld [vmem:[%s191 + $0x30] sm:$0xf]
        %v248 = vld [vmem:[%s191 + $0x34] sm:$0xf]
        %v249 = vld [vmem:[%s191 + $0x38] sm:$0xf]
        %v250 = vld [vmem:[%s191 + $0x3c] sm:$0xf]
        %v251 = vld [vmem:[%s191 + $0x40] sm:$0xf]
        %v252 = vld [vmem:[%s191 + $0x44] sm:$0xf]
        %v253 = vld [vmem:[%s191 + $0x48] sm:$0xf]
        %v254 = vld [vmem:[%s191 + $0x4c] sm:$0xf]
        %v255 = vld [vmem:[%s191 + $0x50] sm:$0xf]
        %v256 = vld [vmem:[%s191 + $0x54] sm:$0xf]
        %v257 = vld [vmem:[%s191 + $0x58] sm:$0xf]
        %v258 = vld [vmem:[%s191 + $0x5c] sm:$0xf]
        %v259 = vld [vmem:[%s191 + $0x60] sm:$0xf]
        %v260 = vld [vmem:[%s191 + $0x64] sm:$0xf]
        %v261 = vld [vmem:[%s191 + $0x68] sm:$0xf]
        %v262 = vld [vmem:[%s191 + $0x6c] sm:$0xf]
        %v263 = vld [vmem:[%s191 + $0x70] sm:$0xf]
        %v264 = vld [vmem:[%s191 + $0x74] sm:$0xf]
        %v265 = vld [vmem:[%s191 + $0x78] sm:$0xf]
        %v266 = vld [vmem:[%s191 + $0x7c] sm:$0xf]
        %v267 = vld [vmem:[%s1] sm:$0xf]
        %v268 = vld [vmem:[%s1 + $0x4] sm:$0xf]
        %v269 = vld [vmem:[%s1 + $0x8] sm:$0xf]
        %v270 = vld [vmem:[%s1 + $0xc] sm:$0xf]
        %v271 = vld [vmem:[%s1 + $0x10] sm:$0xf]
        %v272 = vld [vmem:[%s1 + $0x14] sm:$0xf]
        %v273 = vld [vmem:[%s1 + $0x18] sm:$0xf]
        %v274 = vld [vmem:[%s1 + $0x1c] sm:$0xf]
        %v275 = vld [vmem:[%s1 + $0x20] sm:$0xf]
        %v276 = vld [vmem:[%s1 + $0x24] sm:$0xf]
        %v277 = vld [vmem:[%s1 + $0x28] sm:$0xf]
        %v278 = vld [vmem:[%s1 + $0x2c] sm:$0xf]
        %v279 = vld [vmem:[%s1 + $0x30] sm:$0xf]
        %v280 = vld [vmem:[%s1 + $0x34] sm:$0xf]
        %v281 = vld [vmem:[%s1 + $0x38] sm:$0xf]
        %v282 = vld [vmem:[%s1 + $0x3c] sm:$0xf]
        %v315 = vunpack.c.l.b16 %v235
        %v316 = vunpack.c.l.b16 %v236
        %v317 = vunpack.c.l.b16 %v237
        %v318 = vunpack.c.l.b16 %v238
        %v319 = vunpack.c.l.b16 %v239
        %v320 = vunpack.c.l.b16 %v240
        %v321 = vunpack.c.l.b16 %v241
        %v322 = vunpack.c.l.b16 %v242
        %v323 = vunpack.c.l.b16 %v243
        %v324 = vunpack.c.l.b16 %v244
        %v325 = vunpack.c.l.b16 %v245
        %v326 = vunpack.c.l.b16 %v246
        %v327 = vunpack.c.l.b16 %v247
        %v328 = vunpack.c.l.b16 %v248
        %v329 = vunpack.c.l.b16 %v249
        %v330 = vunpack.c.l.b16 %v250
        %v331 = vunpack.c.l.b16 %v251
        %v332 = vunpack.c.l.b16 %v252
        %v333 = vunpack.c.l.b16 %v253
        %v334 = vunpack.c.l.b16 %v254
        %v335 = vunpack.c.l.b16 %v255
        %v336 = vunpack.c.l.b16 %v256
        %v337 = vunpack.c.l.b16 %v257
        %v338 = vunpack.c.l.b16 %v258
        %v339 = vunpack.c.l.b16 %v259
        %v340 = vunpack.c.l.b16 %v260
        %v341 = vunpack.c.l.b16 %v261
        %v342 = vunpack.c.l.b16 %v262
        %v343 = vunpack.c.l.b16 %v263
        %v344 = vunpack.c.l.b16 %v264
        %v345 = vunpack.c.l.b16 %v265
        %v346 = vunpack.c.l.b16 %v266
        %v347 = vpack.c.b16 %v316, %v315
        %v348 = vpack.c.b16 %v318, %v317
        %v349 = vpack.c.b16 %v320, %v319
        %v350 = vpack.c.b16 %v322, %v321
        %v351 = vpack.c.b16 %v324, %v323
        %v352 = vpack.c.b16 %v326, %v325
        %v353 = vpack.c.b16 %v328, %v327
        %v354 = vpack.c.b16 %v330, %v329
        %v355 = vpack.c.b16 %v332, %v331
        %v356 = vpack.c.b16 %v334, %v333
        %v357 = vpack.c.b16 %v336, %v335
        %v358 = vpack.c.b16 %v338, %v337
        %v359 = vpack.c.b16 %v340, %v339
        %v360 = vpack.c.b16 %v342, %v341
        %v361 = vpack.c.b16 %v344, %v343
        %v362 = vpack.c.b16 %v346, %v345
        %v395 = vunpack.c.l.b16 %v267
        %v396 = vunpack.c.l.b16 %v268
        %v397 = vunpack.c.l.b16 %v269
        %v398 = vunpack.c.l.b16 %v270
        %v399 = vunpack.c.l.b16 %v271
        %v400 = vunpack.c.l.b16 %v272
        %v401 = vunpack.c.l.b16 %v273
        %v402 = vunpack.c.l.b16 %v274
        %v403 = vunpack.c.l.b16 %v275
        %v404 = vunpack.c.l.b16 %v276
        %v405 = vunpack.c.l.b16 %v277
        %v406 = vunpack.c.l.b16 %v278
        %v407 = vunpack.c.l.b16 %v279
        %v408 = vunpack.c.l.b16 %v280
        %v409 = vunpack.c.l.b16 %v281
        %v410 = vunpack.c.l.b16 %v282
        %v411 = vpack.c.b16 %v396, %v395
        %v412 = vpack.c.b16 %v398, %v397
        %v413 = vpack.c.b16 %v400, %v399
        %v414 = vpack.c.b16 %v402, %v401
        %v415 = vpack.c.b16 %v404, %v403
        %v416 = vpack.c.b16 %v406, %v405
        %v417 = vpack.c.b16 %v408, %v407
        %v418 = vpack.c.b16 %v410, %v409
        %427 = vmatprep.subr.bf16.mxu0 0
        %428 = vmatpush1.bf16.msra.mxu0 %v418
        %429 = vmatprep.subr.bf16.mxu0 0
        %430 = vmatpush1.bf16.msra.mxu0 %v417
        %431 = vmatprep.subr.bf16.mxu0 0
        %432 = vmatpush1.bf16.msra.mxu0 %v416
        %433 = vmatprep.subr.bf16.mxu0 0
        %434 = vmatpush1.bf16.msra.mxu0 %v415
        %435 = vmatprep.subr.bf16.mxu0 0
        %436 = vmatpush1.bf16.msra.mxu0 %v414
        %437 = vmatprep.subr.bf16.mxu0 0
        %438 = vmatpush1.bf16.msra.mxu0 %v413
        %439 = vmatprep.subr.bf16.mxu0 0
        %440 = vmatpush1.bf16.msra.mxu0 %v412
        %441 = vmatprep.subr.bf16.mxu0 0
        %442 = vmatpush1.bf16.msra.mxu0 %v411
        %443 = vmatprep.subr.bf16.mxu0 0
        %444 = vmatpush2.bf16.msra.mxu0 0
        %445 = vmatprep.subr.bf16.mxu0 0
        %446 = vmatpush2.bf16.msra.mxu0 0
        %447 = vmatprep.subr.bf16.mxu0 0
        %448 = vmatpush2.bf16.msra.mxu0 0
        %449 = vmatprep.subr.bf16.mxu0 0
        %450 = vmatpush2.bf16.msra.mxu0 0
        %451 = vmatprep.subr.bf16.mxu0 0
        %452 = vmatpush2.bf16.msra.mxu0 0
        %453 = vmatprep.subr.bf16.mxu0 0
        %454 = vmatpush2.bf16.msra.mxu0 0
        %455 = vmatprep.subr.bf16.mxu0 0
        %456 = vmatpush2.bf16.msra.mxu0 0
        %457 = vmatprep.subr.bf16.mxu0 0
        %458 = vmatpush2.bf16.msra.mxu0 0
        %459 = vmatprep.mubr.bf16.mxu0 0
        %460 = vmatmul.mubr.bf16.gmra.mxu0 %v347
        %v461 = vpop.f32.mrf.mxu0
        %v462 = vadd.f32 0.0, %v461
        %v463 = vpop.f32.mrf.mxu0
        %v464 = vpop.f32.mrf.mxu0
        %v465 = vadd.f32 0.0, %v464
        %v466 = vpop.f32.mrf.mxu0
        %467 = vmatprep.mubr.bf16.mxu0 0
        %468 = vmatmul.mubr.bf16.gmra.mxu0 %v348
        %v469 = vpop.f32.mrf.mxu0
        %v470 = vadd.f32 0.0, %v469
        %v471 = vpop.f32.mrf.mxu0
        %v472 = vpop.f32.mrf.mxu0
        %v473 = vadd.f32 0.0, %v472
        %v474 = vpop.f32.mrf.mxu0
        %475 = vmatprep.mubr.bf16.mxu0 0
        %476 = vmatmul.mubr.bf16.gmra.mxu0 %v349
        %v477 = vpop.f32.mrf.mxu0
        %v478 = vadd.f32 0.0, %v477
        %v479 = vpop.f32.mrf.mxu0
        %v480 = vpop.f32.mrf.mxu0
        %v481 = vadd.f32 0.0, %v480
        %v482 = vpop.f32.mrf.mxu0
        %483 = vmatprep.mubr.bf16.mxu0 0
        %484 = vmatmul.mubr.bf16.gmra.mxu0 %v350
        %v485 = vpop.f32.mrf.mxu0
        %v486 = vadd.f32 0.0, %v485
        %v487 = vpop.f32.mrf.mxu0
        %v488 = vpop.f32.mrf.mxu0
        %v489 = vadd.f32 0.0, %v488
        %v490 = vpop.f32.mrf.mxu0
        %491 = vmatprep.mubr.bf16.mxu0 0
        %492 = vmatmul.mubr.bf16.gmra.mxu0 %v351
        %v493 = vpop.f32.mrf.mxu0
        %v494 = vadd.f32 0.0, %v493
        %v495 = vpop.f32.mrf.mxu0
        %v496 = vpop.f32.mrf.mxu0
        %v497 = vadd.f32 0.0, %v496
        %v498 = vpop.f32.mrf.mxu0
        %499 = vmatprep.mubr.bf16.mxu0 0
        %500 = vmatmul.mubr.bf16.gmra.mxu0 %v352
        %v501 = vpop.f32.mrf.mxu0
        %v502 = vadd.f32 0.0, %v501
        %v503 = vpop.f32.mrf.mxu0
        %v504 = vpop.f32.mrf.mxu0
        %v505 = vadd.f32 0.0, %v504
        %v506 = vpop.f32.mrf.mxu0
        %507 = vmatprep.mubr.bf16.mxu0 0
        %508 = vmatmul.mubr.bf16.gmra.mxu0 %v353
        %v509 = vpop.f32.mrf.mxu0
        %v510 = vadd.f32 0.0, %v509
        %v511 = vpop.f32.mrf.mxu0
        %v512 = vpop.f32.mrf.mxu0
        %v513 = vadd.f32 0.0, %v512
        %v514 = vpop.f32.mrf.mxu0
        %515 = vmatprep.mubr.bf16.mxu0 0
        %516 = vmatmul.mubr.bf16.gmra.mxu0 %v354
        %v517 = vpop.f32.mrf.mxu0
        %v518 = vadd.f32 0.0, %v517
        %v519 = vpop.f32.mrf.mxu0
        %v520 = vpop.f32.mrf.mxu0
        %v521 = vadd.f32 0.0, %v520
        %v522 = vpop.f32.mrf.mxu0
        %523 = vmatprep.mubr.bf16.mxu0 0
        %524 = vmatmul.mubr.bf16.gmra.mxu0 %v355
        %v525 = vpop.f32.mrf.mxu0
        %v526 = vadd.f32 0.0, %v525
        %v527 = vpop.f32.mrf.mxu0
        %v528 = vpop.f32.mrf.mxu0
        %v529 = vadd.f32 0.0, %v528
        %v530 = vpop.f32.mrf.mxu0
        %531 = vmatprep.mubr.bf16.mxu0 0
        %532 = vmatmul.mubr.bf16.gmra.mxu0 %v356
        %v533 = vpop.f32.mrf.mxu0
        %v534 = vadd.f32 0.0, %v533
        %v535 = vpop.f32.mrf.mxu0
        %v536 = vpop.f32.mrf.mxu0
        %v537 = vadd.f32 0.0, %v536
        %v538 = vpop.f32.mrf.mxu0
        %539 = vmatprep.mubr.bf16.mxu0 0
        %540 = vmatmul.mubr.bf16.gmra.mxu0 %v357
        %v541 = vpop.f32.mrf.mxu0
        %v542 = vadd.f32 0.0, %v541
        %v543 = vpop.f32.mrf.mxu0
        %v544 = vpop.f32.mrf.mxu0
        %v545 = vadd.f32 0.0, %v544
        %v546 = vpop.f32.mrf.mxu0
        %547 = vmatprep.mubr.bf16.mxu0 0
        %548 = vmatmul.mubr.bf16.gmra.mxu0 %v358
        %v549 = vpop.f32.mrf.mxu0
        %v550 = vadd.f32 0.0, %v549
        %v551 = vpop.f32.mrf.mxu0
        %v552 = vpop.f32.mrf.mxu0
        %v553 = vadd.f32 0.0, %v552
        %v554 = vpop.f32.mrf.mxu0
        %555 = vmatprep.mubr.bf16.mxu0 0
        %556 = vmatmul.mubr.bf16.gmra.mxu0 %v359
        %v557 = vpop.f32.mrf.mxu0
        %v558 = vadd.f32 0.0, %v557
        %v559 = vpop.f32.mrf.mxu0
        %v560 = vpop.f32.mrf.mxu0
        %v561 = vadd.f32 0.0, %v560
        %v562 = vpop.f32.mrf.mxu0
        %563 = vmatprep.mubr.bf16.mxu0 0
        %564 = vmatmul.mubr.bf16.gmra.mxu0 %v360
        %v565 = vpop.f32.mrf.mxu0
        %v566 = vadd.f32 0.0, %v565
        %v567 = vpop.f32.mrf.mxu0
        %v568 = vpop.f32.mrf.mxu0
        %v569 = vadd.f32 0.0, %v568
        %v570 = vpop.f32.mrf.mxu0
        %571 = vmatprep.mubr.bf16.mxu0 0
        %572 = vmatmul.mubr.bf16.gmra.mxu0 %v361
        %v573 = vpop.f32.mrf.mxu0
        %v574 = vadd.f32 0.0, %v573
        %v575 = vpop.f32.mrf.mxu0
        %v576 = vpop.f32.mrf.mxu0
        %v577 = vadd.f32 0.0, %v576
        %v578 = vpop.f32.mrf.mxu0
        %579 = vmatprep.mubr.bf16.mxu0 0
        %580 = vmatmul.mubr.bf16.gmra.mxu0 %v362
        %v581 = vpop.f32.mrf.mxu0
        %v582 = vadd.f32 0.0, %v581
        %v583 = vpop.f32.mrf.mxu0
        %v584 = vpop.f32.mrf.mxu0
        %v585 = vadd.f32 0.0, %v584
        %v586 = vpop.f32.mrf.mxu0
        %587 = vdwg.mxu0
        %v588 = vpack.c.bf16 %v465, %v462
        %v589 = vpack.c.bf16 %v473, %v470
        %v590 = vpack.c.bf16 %v481, %v478
        %v591 = vpack.c.bf16 %v489, %v486
        %v592 = vpack.c.bf16 %v497, %v494
        %v593 = vpack.c.bf16 %v505, %v502
        %v594 = vpack.c.bf16 %v513, %v510
        %v595 = vpack.c.bf16 %v521, %v518
        %v596 = vpack.c.bf16 %v529, %v526
        %v597 = vpack.c.bf16 %v537, %v534
        %v598 = vpack.c.bf16 %v545, %v542
        %v599 = vpack.c.bf16 %v553, %v550
        %v600 = vpack.c.bf16 %v561, %v558
        %v601 = vpack.c.bf16 %v569, %v566
        %v602 = vpack.c.bf16 %v577, %v574
        %v603 = vpack.c.bf16 %v585, %v582
        %v620 = vunpack.c.l.b16 %v588
        %v621 = vunpack.c.h.b16 %v588
        %v622 = vunpack.c.l.b16 %v589
        %v623 = vunpack.c.h.b16 %v589
        %v624 = vunpack.c.l.b16 %v590
        %v625 = vunpack.c.h.b16 %v590
        %v626 = vunpack.c.l.b16 %v591
        %v627 = vunpack.c.h.b16 %v591
        %v628 = vunpack.c.l.b16 %v592
        %v629 = vunpack.c.h.b16 %v592
        %v630 = vunpack.c.l.b16 %v593
        %v631 = vunpack.c.h.b16 %v593
        %v632 = vunpack.c.l.b16 %v594
        %v633 = vunpack.c.h.b16 %v594
        %v634 = vunpack.c.l.b16 %v595
        %v635 = vunpack.c.h.b16 %v595
        %v636 = vunpack.c.l.b16 %v596
        %v637 = vunpack.c.h.b16 %v596
        %v638 = vunpack.c.l.b16 %v597
        %v639 = vunpack.c.h.b16 %v597
        %v640 = vunpack.c.l.b16 %v598
        %v641 = vunpack.c.h.b16 %v598
        %v642 = vunpack.c.l.b16 %v599
        %v643 = vunpack.c.h.b16 %v599
        %v644 = vunpack.c.l.b16 %v600
        %v645 = vunpack.c.h.b16 %v600
        %v646 = vunpack.c.l.b16 %v601
        %v647 = vunpack.c.h.b16 %v601
        %v648 = vunpack.c.l.b16 %v602
        %v649 = vunpack.c.h.b16 %v602
        %v650 = vunpack.c.l.b16 %v603
        %v651 = vunpack.c.h.b16 %v603
        %v652 = vpack.c.b16 %v620, %v620
        %v653 = vpack.c.b16 %v621, %v621
        %v654 = vpack.c.b16 %v622, %v622
        %v655 = vpack.c.b16 %v623, %v623
        %v656 = vpack.c.b16 %v624, %v624
        %v657 = vpack.c.b16 %v625, %v625
        %v658 = vpack.c.b16 %v626, %v626
        %v659 = vpack.c.b16 %v627, %v627
        %v660 = vpack.c.b16 %v628, %v628
        %v661 = vpack.c.b16 %v629, %v629
        %v662 = vpack.c.b16 %v630, %v630
        %v663 = vpack.c.b16 %v631, %v631
        %v664 = vpack.c.b16 %v632, %v632
        %v665 = vpack.c.b16 %v633, %v633
        %v666 = vpack.c.b16 %v634, %v634
        %v667 = vpack.c.b16 %v635, %v635
        %v668 = vpack.c.b16 %v636, %v636
        %v669 = vpack.c.b16 %v637, %v637
        %v670 = vpack.c.b16 %v638, %v638
        %v671 = vpack.c.b16 %v639, %v639
        %v672 = vpack.c.b16 %v640, %v640
        %v673 = vpack.c.b16 %v641, %v641
        %v674 = vpack.c.b16 %v642, %v642
        %v675 = vpack.c.b16 %v643, %v643
        %v676 = vpack.c.b16 %v644, %v644
        %v677 = vpack.c.b16 %v645, %v645
        %v678 = vpack.c.b16 %v646, %v646
        %v679 = vpack.c.b16 %v647, %v647
        %v680 = vpack.c.b16 %v648, %v648
        %v681 = vpack.c.b16 %v649, %v649
        %v682 = vpack.c.b16 %v650, %v650
        %v683 = vpack.c.b16 %v651, %v651
        %vm716 = vcmask 257024
        %717 = vst.msk [vmem:[%s226] sm:$0xf] %vm716, %v652
        %718 = vst.msk [vmem:[%s226 + $0x4] sm:$0xf] %vm716, %v653
        %719 = vst.msk [vmem:[%s226 + $0x8] sm:$0xf] %vm716, %v654
        %720 = vst.msk [vmem:[%s226 + $0xc] sm:$0xf] %vm716, %v655
        %721 = vst.msk [vmem:[%s226 + $0x10] sm:$0xf] %vm716, %v656
        %722 = vst.msk [vmem:[%s226 + $0x14] sm:$0xf] %vm716, %v657
        %723 = vst.msk [vmem:[%s226 + $0x18] sm:$0xf] %vm716, %v658
        %724 = vst.msk [vmem:[%s226 + $0x1c] sm:$0xf] %vm716, %v659
        %725 = vst.msk [vmem:[%s226 + $0x20] sm:$0xf] %vm716, %v660
        %726 = vst.msk [vmem:[%s226 + $0x24] sm:$0xf] %vm716, %v661
        %727 = vst.msk [vmem:[%s226 + $0x28] sm:$0xf] %vm716, %v662
        %728 = vst.msk [vmem:[%s226 + $0x2c] sm:$0xf] %vm716, %v663
        %729 = vst.msk [vmem:[%s226 + $0x30] sm:$0xf] %vm716, %v664
        %730 = vst.msk [vmem:[%s226 + $0x34] sm:$0xf] %vm716, %v665
        %731 = vst.msk [vmem:[%s226 + $0x38] sm:$0xf] %vm716, %v666
        %732 = vst.msk [vmem:[%s226 + $0x3c] sm:$0xf] %vm716, %v667
        %733 = vst.msk [vmem:[%s226 + $0x40] sm:$0xf] %vm716, %v668
        %734 = vst.msk [vmem:[%s226 + $0x44] sm:$0xf] %vm716, %v669
        %735 = vst.msk [vmem:[%s226 + $0x48] sm:$0xf] %vm716, %v670
        %736 = vst.msk [vmem:[%s226 + $0x4c] sm:$0xf] %vm716, %v671
        %737 = vst.msk [vmem:[%s226 + $0x50] sm:$0xf] %vm716, %v672
        %738 = vst.msk [vmem:[%s226 + $0x54] sm:$0xf] %vm716, %v673
        %739 = vst.msk [vmem:[%s226 + $0x58] sm:$0xf] %vm716, %v674
        %740 = vst.msk [vmem:[%s226 + $0x5c] sm:$0xf] %vm716, %v675
        %741 = vst.msk [vmem:[%s226 + $0x60] sm:$0xf] %vm716, %v676
        %742 = vst.msk [vmem:[%s226 + $0x64] sm:$0xf] %vm716, %v677
        %743 = vst.msk [vmem:[%s226 + $0x68] sm:$0xf] %vm716, %v678
        %744 = vst.msk [vmem:[%s226 + $0x6c] sm:$0xf] %vm716, %v679
        %745 = vst.msk [vmem:[%s226 + $0x70] sm:$0xf] %vm716, %v680
        %746 = vst.msk [vmem:[%s226 + $0x74] sm:$0xf] %vm716, %v681
        %747 = vst.msk [vmem:[%s226 + $0x78] sm:$0xf] %vm716, %v682
        %748 = vst.msk [vmem:[%s226 + $0x7c] sm:$0xf] %vm716, %v683
        %v749 = vld [vmem:[%s2] sm:$0xf]
        %v750 = vld [vmem:[%s2 + $0x4] sm:$0xf]
        %v751 = vld [vmem:[%s2 + $0x8] sm:$0xf]
        %v752 = vld [vmem:[%s2 + $0xc] sm:$0xf]
        %v753 = vld [vmem:[%s2 + $0x10] sm:$0xf]
        %v754 = vld [vmem:[%s2 + $0x14] sm:$0xf]
        %v755 = vld [vmem:[%s2 + $0x18] sm:$0xf]
        %v756 = vld [vmem:[%s2 + $0x1c] sm:$0xf]
        %v757 = vld [vmem:[%s2 + $0x20] sm:$0xf]
        %v758 = vld [vmem:[%s2 + $0x24] sm:$0xf]
        %v759 = vld [vmem:[%s2 + $0x28] sm:$0xf]
        %v760 = vld [vmem:[%s2 + $0x2c] sm:$0xf]
        %v761 = vld [vmem:[%s2 + $0x30] sm:$0xf]
        %v762 = vld [vmem:[%s2 + $0x34] sm:$0xf]
        %v763 = vld [vmem:[%s2 + $0x38] sm:$0xf]
        %v764 = vld [vmem:[%s2 + $0x3c] sm:$0xf]
        %v781 = vunpack.c.l.b16 %v749
        %v782 = vunpack.c.l.b16 %v750
        %v783 = vunpack.c.l.b16 %v751
        %v784 = vunpack.c.l.b16 %v752
        %v785 = vunpack.c.l.b16 %v753
        %v786 = vunpack.c.l.b16 %v754
        %v787 = vunpack.c.l.b16 %v755
        %v788 = vunpack.c.l.b16 %v756
        %v789 = vunpack.c.l.b16 %v757
        %v790 = vunpack.c.l.b16 %v758
        %v791 = vunpack.c.l.b16 %v759
        %v792 = vunpack.c.l.b16 %v760
        %v793 = vunpack.c.l.b16 %v761
        %v794 = vunpack.c.l.b16 %v762
        %v795 = vunpack.c.l.b16 %v763
        %v796 = vunpack.c.l.b16 %v764
        %v797 = vpack.c.b16 %v782, %v781
        %v798 = vpack.c.b16 %v784, %v783
        %v799 = vpack.c.b16 %v786, %v785
        %v800 = vpack.c.b16 %v788, %v787
        %v801 = vpack.c.b16 %v790, %v789
        %v802 = vpack.c.b16 %v792, %v791
        %v803 = vpack.c.b16 %v794, %v793
        %v804 = vpack.c.b16 %v796, %v795
        %813 = vmatprep.subr.bf16.mxu0 0
        %814 = vmatpush1.bf16.msra.mxu0 %v804
        %815 = vmatprep.subr.bf16.mxu0 0
        %816 = vmatpush1.bf16.msra.mxu0 %v803
        %817 = vmatprep.subr.bf16.mxu0 0
        %818 = vmatpush1.bf16.msra.mxu0 %v802
        %819 = vmatprep.subr.bf16.mxu0 0
        %820 = vmatpush1.bf16.msra.mxu0 %v801
        %821 = vmatprep.subr.bf16.mxu0 0
        %822 = vmatpush1.bf16.msra.mxu0 %v800
        %823 = vmatprep.subr.bf16.mxu0 0
        %824 = vmatpush1.bf16.msra.mxu0 %v799
        %825 = vmatprep.subr.bf16.mxu0 0
        %826 = vmatpush1.bf16.msra.mxu0 %v798
        %827 = vmatprep.subr.bf16.mxu0 0
        %828 = vmatpush1.bf16.msra.mxu0 %v797
        %829 = vmatprep.subr.bf16.mxu0 0
        %830 = vmatpush2.bf16.msra.mxu0 0
        %831 = vmatprep.subr.bf16.mxu0 0
        %832 = vmatpush2.bf16.msra.mxu0 0
        %833 = vmatprep.subr.bf16.mxu0 0
        %834 = vmatpush2.bf16.msra.mxu0 0
        %835 = vmatprep.subr.bf16.mxu0 0
        %836 = vmatpush2.bf16.msra.mxu0 0
        %837 = vmatprep.subr.bf16.mxu0 0
        %838 = vmatpush2.bf16.msra.mxu0 0
        %839 = vmatprep.subr.bf16.mxu0 0
        %840 = vmatpush2.bf16.msra.mxu0 0
        %841 = vmatprep.subr.bf16.mxu0 0
        %842 = vmatpush2.bf16.msra.mxu0 0
        %843 = vmatprep.subr.bf16.mxu0 0
        %844 = vmatpush2.bf16.msra.mxu0 0
        %845 = vmatprep.mubr.bf16.mxu0 0
        %846 = vmatmul.mubr.bf16.gmra.mxu0 %v347
        %v847 = vpop.f32.mrf.mxu0
        %v848 = vadd.f32 0.0, %v847
        %v849 = vpop.f32.mrf.mxu0
        %v850 = vpop.f32.mrf.mxu0
        %v851 = vadd.f32 0.0, %v850
        %v852 = vpop.f32.mrf.mxu0
        %853 = vmatprep.mubr.bf16.mxu0 0
        %854 = vmatmul.mubr.bf16.gmra.mxu0 %v348
        %v855 = vpop.f32.mrf.mxu0
        %v856 = vadd.f32 0.0, %v855
        %v857 = vpop.f32.mrf.mxu0
        %v858 = vpop.f32.mrf.mxu0
        %v859 = vadd.f32 0.0, %v858
        %v860 = vpop.f32.mrf.mxu0
        %861 = vmatprep.mubr.bf16.mxu0 0
        %862 = vmatmul.mubr.bf16.gmra.mxu0 %v349
        %v863 = vpop.f32.mrf.mxu0
        %v864 = vadd.f32 0.0, %v863
        %v865 = vpop.f32.mrf.mxu0
        %v866 = vpop.f32.mrf.mxu0
        %v867 = vadd.f32 0.0, %v866
        %v868 = vpop.f32.mrf.mxu0
        %869 = vmatprep.mubr.bf16.mxu0 0
        %870 = vmatmul.mubr.bf16.gmra.mxu0 %v350
        %v871 = vpop.f32.mrf.mxu0
        %v872 = vadd.f32 0.0, %v871
        %v873 = vpop.f32.mrf.mxu0
        %v874 = vpop.f32.mrf.mxu0
        %v875 = vadd.f32 0.0, %v874
        %v876 = vpop.f32.mrf.mxu0
        %877 = vmatprep.mubr.bf16.mxu0 0
        %878 = vmatmul.mubr.bf16.gmra.mxu0 %v351
        %v879 = vpop.f32.mrf.mxu0
        %v880 = vadd.f32 0.0, %v879
        %v881 = vpop.f32.mrf.mxu0
        %v882 = vpop.f32.mrf.mxu0
        %v883 = vadd.f32 0.0, %v882
        %v884 = vpop.f32.mrf.mxu0
        %885 = vmatprep.mubr.bf16.mxu0 0
        %886 = vmatmul.mubr.bf16.gmra.mxu0 %v352
        %v887 = vpop.f32.mrf.mxu0
        %v888 = vadd.f32 0.0, %v887
        %v889 = vpop.f32.mrf.mxu0
        %v890 = vpop.f32.mrf.mxu0
        %v891 = vadd.f32 0.0, %v890
        %v892 = vpop.f32.mrf.mxu0
        %893 = vmatprep.mubr.bf16.mxu0 0
        %894 = vmatmul.mubr.bf16.gmra.mxu0 %v353
        %v895 = vpop.f32.mrf.mxu0
        %v896 = vadd.f32 0.0, %v895
        %v897 = vpop.f32.mrf.mxu0
        %v898 = vpop.f32.mrf.mxu0
        %v899 = vadd.f32 0.0, %v898
        %v900 = vpop.f32.mrf.mxu0
        %901 = vmatprep.mubr.bf16.mxu0 0
        %902 = vmatmul.mubr.bf16.gmra.mxu0 %v354
        %v903 = vpop.f32.mrf.mxu0
        %v904 = vadd.f32 0.0, %v903
        %v905 = vpop.f32.mrf.mxu0
        %v906 = vpop.f32.mrf.mxu0
        %v907 = vadd.f32 0.0, %v906
        %v908 = vpop.f32.mrf.mxu0
        %909 = vmatprep.mubr.bf16.mxu0 0
        %910 = vmatmul.mubr.bf16.gmra.mxu0 %v355
        %v911 = vpop.f32.mrf.mxu0
        %v912 = vadd.f32 0.0, %v911
        %v913 = vpop.f32.mrf.mxu0
        %v914 = vpop.f32.mrf.mxu0
        %v915 = vadd.f32 0.0, %v914
        %v916 = vpop.f32.mrf.mxu0
        %917 = vmatprep.mubr.bf16.mxu0 0
        %918 = vmatmul.mubr.bf16.gmra.mxu0 %v356
        %v919 = vpop.f32.mrf.mxu0
        %v920 = vadd.f32 0.0, %v919
        %v921 = vpop.f32.mrf.mxu0
        %v922 = vpop.f32.mrf.mxu0
        %v923 = vadd.f32 0.0, %v922
        %v924 = vpop.f32.mrf.mxu0
        %925 = vmatprep.mubr.bf16.mxu0 0
        %926 = vmatmul.mubr.bf16.gmra.mxu0 %v357
        %v927 = vpop.f32.mrf.mxu0
        %v928 = vadd.f32 0.0, %v927
        %v929 = vpop.f32.mrf.mxu0
        %v930 = vpop.f32.mrf.mxu0
        %v931 = vadd.f32 0.0, %v930
        %v932 = vpop.f32.mrf.mxu0
        %933 = vmatprep.mubr.bf16.mxu0 0
        %934 = vmatmul.mubr.bf16.gmra.mxu0 %v358
        %v935 = vpop.f32.mrf.mxu0
        %v936 = vadd.f32 0.0, %v935
        %v937 = vpop.f32.mrf.mxu0
        %v938 = vpop.f32.mrf.mxu0
        %v939 = vadd.f32 0.0, %v938
        %v940 = vpop.f32.mrf.mxu0
        %941 = vmatprep.mubr.bf16.mxu0 0
        %942 = vmatmul.mubr.bf16.gmra.mxu0 %v359
        %v943 = vpop.f32.mrf.mxu0
        %v944 = vadd.f32 0.0, %v943
        %v945 = vpop.f32.mrf.mxu0
        %v946 = vpop.f32.mrf.mxu0
        %v947 = vadd.f32 0.0, %v946
        %v948 = vpop.f32.mrf.mxu0
        %949 = vmatprep.mubr.bf16.mxu0 0
        %950 = vmatmul.mubr.bf16.gmra.mxu0 %v360
        %v951 = vpop.f32.mrf.mxu0
        %v952 = vadd.f32 0.0, %v951
        %v953 = vpop.f32.mrf.mxu0
        %v954 = vpop.f32.mrf.mxu0
        %v955 = vadd.f32 0.0, %v954
        %v956 = vpop.f32.mrf.mxu0
        %957 = vmatprep.mubr.bf16.mxu0 0
        %958 = vmatmul.mubr.bf16.gmra.mxu0 %v361
        %v959 = vpop.f32.mrf.mxu0
        %v960 = vadd.f32 0.0, %v959
        %v961 = vpop.f32.mrf.mxu0
        %v962 = vpop.f32.mrf.mxu0
        %v963 = vadd.f32 0.0, %v962
        %v964 = vpop.f32.mrf.mxu0
        %965 = vmatprep.mubr.bf16.mxu0 0
        %966 = vmatmul.mubr.bf16.gmra.mxu0 %v362
        %v967 = vpop.f32.mrf.mxu0
        %v968 = vadd.f32 0.0, %v967
        %v969 = vpop.f32.mrf.mxu0
        %v970 = vpop.f32.mrf.mxu0
        %v971 = vadd.f32 0.0, %v970
        %v972 = vpop.f32.mrf.mxu0
        %973 = vdwg.mxu0
        %v974 = vpack.c.bf16 %v851, %v848
        %v975 = vpack.c.bf16 %v859, %v856
        %v976 = vpack.c.bf16 %v867, %v864
        %v977 = vpack.c.bf16 %v875, %v872
        %v978 = vpack.c.bf16 %v883, %v880
        %v979 = vpack.c.bf16 %v891, %v888
        %v980 = vpack.c.bf16 %v899, %v896
        %v981 = vpack.c.bf16 %v907, %v904
        %v982 = vpack.c.bf16 %v915, %v912
        %v983 = vpack.c.bf16 %v923, %v920
        %v984 = vpack.c.bf16 %v931, %v928
        %v985 = vpack.c.bf16 %v939, %v936
        %v986 = vpack.c.bf16 %v947, %v944
        %v987 = vpack.c.bf16 %v955, %v952
        %v988 = vpack.c.bf16 %v963, %v960
        %v989 = vpack.c.bf16 %v971, %v968
        %v1006 = vunpack.c.l.b16 %v974
        %v1007 = vunpack.c.h.b16 %v974
        %v1008 = vunpack.c.l.b16 %v975
        %v1009 = vunpack.c.h.b16 %v975
        %v1010 = vunpack.c.l.b16 %v976
        %v1011 = vunpack.c.h.b16 %v976
        %v1012 = vunpack.c.l.b16 %v977
        %v1013 = vunpack.c.h.b16 %v977
        %v1014 = vunpack.c.l.b16 %v978
        %v1015 = vunpack.c.h.b16 %v978
        %v1016 = vunpack.c.l.b16 %v979
        %v1017 = vunpack.c.h.b16 %v979
        %v1018 = vunpack.c.l.b16 %v980
        %v1019 = vunpack.c.h.b16 %v980
        %v1020 = vunpack.c.l.b16 %v981
        %v1021 = vunpack.c.h.b16 %v981
        %v1022 = vunpack.c.l.b16 %v982
        %v1023 = vunpack.c.h.b16 %v982
        %v1024 = vunpack.c.l.b16 %v983
        %v1025 = vunpack.c.h.b16 %v983
        %v1026 = vunpack.c.l.b16 %v984
        %v1027 = vunpack.c.h.b16 %v984
        %v1028 = vunpack.c.l.b16 %v985
        %v1029 = vunpack.c.h.b16 %v985
        %v1030 = vunpack.c.l.b16 %v986
        %v1031 = vunpack.c.h.b16 %v986
        %v1032 = vunpack.c.l.b16 %v987
        %v1033 = vunpack.c.h.b16 %v987
        %v1034 = vunpack.c.l.b16 %v988
        %v1035 = vunpack.c.h.b16 %v988
        %v1036 = vunpack.c.l.b16 %v989
        %v1037 = vunpack.c.h.b16 %v989
        %v1038 = vpack.c.b16 %v1006, %v1006
        %v1039 = vpack.c.b16 %v1007, %v1007
        %v1040 = vpack.c.b16 %v1008, %v1008
        %v1041 = vpack.c.b16 %v1009, %v1009
        %v1042 = vpack.c.b16 %v1010, %v1010
        %v1043 = vpack.c.b16 %v1011, %v1011
        %v1044 = vpack.c.b16 %v1012, %v1012
        %v1045 = vpack.c.b16 %v1013, %v1013
        %v1046 = vpack.c.b16 %v1014, %v1014
        %v1047 = vpack.c.b16 %v1015, %v1015
        %v1048 = vpack.c.b16 %v1016, %v1016
        %v1049 = vpack.c.b16 %v1017, %v1017
        %v1050 = vpack.c.b16 %v1018, %v1018
        %v1051 = vpack.c.b16 %v1019, %v1019
        %v1052 = vpack.c.b16 %v1020, %v1020
        %v1053 = vpack.c.b16 %v1021, %v1021
        %v1054 = vpack.c.b16 %v1022, %v1022
        %v1055 = vpack.c.b16 %v1023, %v1023
        %v1056 = vpack.c.b16 %v1024, %v1024
        %v1057 = vpack.c.b16 %v1025, %v1025
        %v1058 = vpack.c.b16 %v1026, %v1026
        %v1059 = vpack.c.b16 %v1027, %v1027
        %v1060 = vpack.c.b16 %v1028, %v1028
        %v1061 = vpack.c.b16 %v1029, %v1029
        %v1062 = vpack.c.b16 %v1030, %v1030
        %v1063 = vpack.c.b16 %v1031, %v1031
        %v1064 = vpack.c.b16 %v1032, %v1032
        %v1065 = vpack.c.b16 %v1033, %v1033
        %v1066 = vpack.c.b16 %v1034, %v1034
        %v1067 = vpack.c.b16 %v1035, %v1035
        %v1068 = vpack.c.b16 %v1036, %v1036
        %v1069 = vpack.c.b16 %v1037, %v1037
        %1102 = vst.msk [vmem:[%s232] sm:$0xf] %vm716, %v1038
        %1103 = vst.msk [vmem:[%s232 + $0x4] sm:$0xf] %vm716, %v1039
        %1104 = vst.msk [vmem:[%s232 + $0x8] sm:$0xf] %vm716, %v1040
        %1105 = vst.msk [vmem:[%s232 + $0xc] sm:$0xf] %vm716, %v1041
        %1106 = vst.msk [vmem:[%s232 + $0x10] sm:$0xf] %vm716, %v1042
        %1107 = vst.msk [vmem:[%s232 + $0x14] sm:$0xf] %vm716, %v1043
        %1108 = vst.msk [vmem:[%s232 + $0x18] sm:$0xf] %vm716, %v1044
        %1109 = vst.msk [vmem:[%s232 + $0x1c] sm:$0xf] %vm716, %v1045
        %1110 = vst.msk [vmem:[%s232 + $0x20] sm:$0xf] %vm716, %v1046
        %1111 = vst.msk [vmem:[%s232 + $0x24] sm:$0xf] %vm716, %v1047
        %1112 = vst.msk [vmem:[%s232 + $0x28] sm:$0xf] %vm716, %v1048
        %1113 = vst.msk [vmem:[%s232 + $0x2c] sm:$0xf] %vm716, %v1049
        %1114 = vst.msk [vmem:[%s232 + $0x30] sm:$0xf] %vm716, %v1050
        %1115 = vst.msk [vmem:[%s232 + $0x34] sm:$0xf] %vm716, %v1051
        %1116 = vst.msk [vmem:[%s232 + $0x38] sm:$0xf] %vm716, %v1052
        %1117 = vst.msk [vmem:[%s232 + $0x3c] sm:$0xf] %vm716, %v1053
        %1118 = vst.msk [vmem:[%s232 + $0x40] sm:$0xf] %vm716, %v1054
        %1119 = vst.msk [vmem:[%s232 + $0x44] sm:$0xf] %vm716, %v1055
        %1120 = vst.msk [vmem:[%s232 + $0x48] sm:$0xf] %vm716, %v1056
        %1121 = vst.msk [vmem:[%s232 + $0x4c] sm:$0xf] %vm716, %v1057
        %1122 = vst.msk [vmem:[%s232 + $0x50] sm:$0xf] %vm716, %v1058
        %1123 = vst.msk [vmem:[%s232 + $0x54] sm:$0xf] %vm716, %v1059
        %1124 = vst.msk [vmem:[%s232 + $0x58] sm:$0xf] %vm716, %v1060
        %1125 = vst.msk [vmem:[%s232 + $0x5c] sm:$0xf] %vm716, %v1061
        %1126 = vst.msk [vmem:[%s232 + $0x60] sm:$0xf] %vm716, %v1062
        %1127 = vst.msk [vmem:[%s232 + $0x64] sm:$0xf] %vm716, %v1063
        %1128 = vst.msk [vmem:[%s232 + $0x68] sm:$0xf] %vm716, %v1064
        %1129 = vst.msk [vmem:[%s232 + $0x6c] sm:$0xf] %vm716, %v1065
        %1130 = vst.msk [vmem:[%s232 + $0x70] sm:$0xf] %vm716, %v1066
        %1131 = vst.msk [vmem:[%s232 + $0x74] sm:$0xf] %vm716, %v1067
        %1132 = vst.msk [vmem:[%s232 + $0x78] sm:$0xf] %vm716, %v1068
        %1133 = vst.msk [vmem:[%s232 + $0x7c] sm:$0xf] %vm716, %v1069
        %s1134 = smul.u32 32, %s19
        %p1135 = scmp.lt.s32.totalorder %s1134, 63
        %s1136 = scalar_select %p1135, %s1134, 63
        %s1137 = smul.addr %s1136, 4
        %s1138 = scalar_lea.vmem %s3, %s1137
        %s1139 = smul.u32 32, %s19
        %p1140 = scmp.lt.s32.totalorder %s1139, 63
        %s1141 = scalar_select %p1140, %s1139, 63
        %s1142 = smul.addr %s1141, 4
        %s1143 = scalar_lea.vmem %s4, %s1142
        // Predicated region
        $region37: #{tpu_custom_call.1} parent=31 // pred_check
          %p1144 = pneg %p105
        $region38: #{tpu_custom_call.1} parent=31 // pred_check_branch
          %1146 = sbr.rel (%p1144) target = $region40
        $region39: #{tpu_custom_call.1} parent=31 // pred_region
          %s1147 = smul.u32 32, %s19
        $region40: #{tpu_custom_call.1} parent=31 // pred_fallthru
          _
        // Predicated region
        $region41: #{tpu_custom_call.1} parent=31 // pred_check
          %p1148 = pneg %p131
        $region42: #{tpu_custom_call.1} parent=31 // pred_check_branch
          %1150 = sbr.rel (%p1148) target = $region44
        $region43: #{tpu_custom_call.1} parent=31 // pred_region
          %s1151 = smul.u32 32, %s19
        $region44: #{tpu_custom_call.1} parent=31 // pred_fallthru
          _
      $region32: #{tpu_custom_call.1} parent=5 // pred_fallthru
        _
      %p1152 = scmp.le.s32.totalorder 2, %s14
      // Predicated region
      $region45: #{tpu_custom_call.1} parent=5 // pred_check
        %p1153 = pneg %p1152
      $region46: #{tpu_custom_call.1} parent=5 // pred_check_branch
        %1155 = sbr.rel (%p1153) target = $region48
      $region47: #{tpu_custom_call.1} parent=5 // pred_region
        %s1156 = ssub.s32 %s14, 2
        // Predicated region
        $region49: #{tpu_custom_call.1} parent=47 // pred_check
          %p1157 = pneg %p111
        $region50: #{tpu_custom_call.1} parent=47 // pred_check_branch
          %1159 = sbr.rel (%p1157) target = $region52
        $region51: #{tpu_custom_call.1} parent=47 // pred_region
          %s1160 = smul.u32 32, %s20
          %p1161 = scmp.lt.s32.totalorder %s1160, 63
          %s1162 = scalar_select %p1161, %s1160, 63
          %s1163 = smul.addr %s1162, 4
          %s1164 = scalar_lea.vmem %s3, %s1163
        $region52: #{tpu_custom_call.1} parent=47 // pred_fallthru
          _
        // Predicated region
        $region53: #{tpu_custom_call.1} parent=47 // pred_check
          %p1165 = pneg %p137
        $region54: #{tpu_custom_call.1} parent=47 // pred_check_branch
          %1167 = sbr.rel (%p1165) target = $region56
        $region55: #{tpu_custom_call.1} parent=47 // pred_region
          %s1168 = smul.u32 32, %s20
          %p1169 = scmp.lt.s32.totalorder %s1168, 63
          %s1170 = scalar_select %p1169, %s1168, 63
          %s1171 = smul.addr %s1170, 4
          %s1172 = scalar_lea.vmem %s4, %s1171
        $region56: #{tpu_custom_call.1} parent=47 // pred_fallthru
          _
      $region48: #{tpu_custom_call.1} parent=5 // pred_fallthru
        _
    $region6: #{tpu_custom_call.1} parent=1 // loop_footer
      %s18 = sadd.s32 1, %s14
    $region7: #{tpu_custom_call.1} parent=1 // loop_footer_branch
      %13 = sbr.rel target = $region3
    $region8: #{tpu_custom_call.1} parent=1 // loop_exit
      _
    %1173 = vsyncpa [#allocation3], 1
    %s1174 = scalar_lea.sflag [#allocation3], 1
    %1175 = vsyncpa %s1174, 1

</llo_original>
